<compile_context>
chip_gen: v7x
topology: tpu7x:2x2x1
jax: 0.10.0
libtpu: 0.0.40
codegen_flags: <defaults>
</compile_context>

<pallas_src>
import functools

import jax
import jax.numpy as jnp
from jax.experimental import pallas as pl
from jax.experimental.pallas import tpu as pltpu


def down_kernel(xp_ref, w1_ref, b1_ref, w2_ref, b2_ref, o_ref, *, use_xlu_roll):
    """One batch element (one pooled segment) per grid step.

    xp : (Cin,  Lh)  bf16   pooled input (MaxPool done in the wrapper)
    w1 : (3, Cmid, Cin) bf16  BN1-scale-folded conv1 weights, tap-major
    b1 : (Cmid, 1) f32        BN1 additive shift
    w2 : (3, Cout, Cmid) bf16 BN2-scale-folded conv2 weights, tap-major
    b2 : (Cout, 1) f32        BN2 additive shift
    o  : (Cout, Lh)           output
    """
    W = xp_ref.shape[-1]

    # Segment-boundary masks (one segment per block), computed once and
    # reused by both conv layers.
    pos = jax.lax.broadcasted_iota(jnp.int32, (1, W), 1)
    left = pos == 0           # zero the "previous" tap at the segment start
    right = pos == W - 1      # zero the "next" tap at the segment end

    def roll1(x, shift):
        # +-1 lane shift.  pltpu.roll -> XLU rotate slot (free next to the MXU
        # work); only used when the lane width is 128-aligned, otherwise fall
        # back to jnp.roll (tiny shapes, e.g. the unit test).
        if use_xlu_roll:
            return pltpu.roll(x, shift % W, axis=1)
        return jnp.roll(x, shift, axis=1)

    def conv_bn_relu(x, w_ref, b_ref):
        # x: (C, W) bf16 ; w_ref: (3, Co, C) bf16 ; b_ref: (Co, 1) f32
        zero = jnp.zeros((), x.dtype)
        x_prev = jnp.where(left, zero, roll1(x, 1))    # x[t-1], 0 at t=0
        x_next = jnp.where(right, zero, roll1(x, -1))  # x[t+1], 0 at t=W-1
        # Three accumulating MXU dots (no (3C, W) concat temporaries).
        y = jnp.dot(w_ref[1], x, preferred_element_type=jnp.float32)
        y = y + jnp.dot(w_ref[0], x_prev, preferred_element_type=jnp.float32)
        y = y + jnp.dot(w_ref[2], x_next, preferred_element_type=jnp.float32)
        return jnp.maximum(y + b_ref[...], 0.0)        # BN shift + ReLU (f32)

    x = xp_ref[...]                                             # (Cin, W) bf16
    h = conv_bn_relu(x, w1_ref, b1_ref).astype(x.dtype)         # (Cmid, W) bf16
    o_ref[...] = conv_bn_relu(h, w2_ref, b2_ref).astype(o_ref.dtype)


def down_pallas(x, w1, g1, be1, m1, v1, w2, g2, be2, m2, v2,
                eps=1e-5, out_dtype=jnp.float32):
    """Down(x) with eval-mode BatchNorm (running statistics).

    x  : (N, Cin, L) f32, L even
    w1 : (Cmid, Cin, 3)  w2 : (Cout, Cmid, 3)   PyTorch Conv1d weights, no bias
    g*/be*/m*/v* : BatchNorm weight / bias / running_mean / running_var
    returns (N, Cout, L // 2) in `out_dtype` (f32 matches the PyTorch module).
    """
    N, Cin, L = x.shape
    Cmid = w1.shape[0]
    Cout = w2.shape[0]
    assert L % 2 == 0, "MaxPool1d(2) path assumes even length"
    Lh = L // 2
    cdt = jnp.bfloat16

    # ---- MaxPool1d(2) + bf16 cast: one fused XLA pass, no transposes --------
    xp = jnp.max(x.reshape(N, Cin, Lh, 2), axis=-1).astype(cdt)   # (N, Cin, Lh)

    # ---- fold BN (eval mode) into weights (scale) + per-channel shift -------
    s1 = g1 / jnp.sqrt(v1 + eps)
    s2 = g2 / jnp.sqrt(v2 + eps)
    b1 = (be1 - m1 * s1).reshape(Cmid, 1).astype(jnp.float32)
    b2 = (be2 - m2 * s2).reshape(Cout, 1).astype(jnp.float32)
    # Tap-major (3, Cout, Cin): tap 0 = left (x[t-1]), 1 = center, 2 = right.
    w1_t = jnp.transpose(w1 * s1[:, None, None], (2, 0, 1)).astype(cdt)
    w2_t = jnp.transpose(w2 * s2[:, None, None], (2, 0, 1)).astype(cdt)

    kernel = functools.partial(down_kernel, use_xlu_roll=(Lh % 128 == 0))

    # ---- generation-aware scoped-VMEM limit (v7x: 64 MiB physical) ----------
    out_bytes = jnp.dtype(out_dtype).itemsize
    est_bytes = (
        2 * (Cin * 2 + Cout * out_bytes) * Lh          # double-buffered in/out
        + (4 * Cin + 8 * Cmid + 4 * Cout) * Lh         # in-kernel temporaries
        + 6 * (Cmid * Cin + Cout * Cmid)               # resident weights (bf16)
    )
    vmem_limit = int(min(64 * 2**20, max(32 * 2**20, 2 * est_bytes)))

    out = pl.pallas_call(
        kernel,
        out_shape=jax.ShapeDtypeStruct((N, Cout, Lh), out_dtype),
        grid_spec=pltpu.PrefetchScalarGridSpec(
            num_scalar_prefetch=0,
            grid=(N,),                                  # >= 2 steps for v7x's 2 TCs
            in_specs=[
                pl.BlockSpec((pl.Squeezed(), Cin, Lh), lambda n: (n, 0, 0)),
                pl.BlockSpec((3, Cmid, Cin), lambda n: (0, 0, 0)),   # resident
                pl.BlockSpec((Cmid, 1), lambda n: (0, 0)),
                pl.BlockSpec((3, Cout, Cmid), lambda n: (0, 0, 0)),  # resident
                pl.BlockSpec((Cout, 1), lambda n: (0, 0)),
            ],
            out_specs=pl.BlockSpec((pl.Squeezed(), Cout, Lh), lambda n: (n, 0, 0)),
        ),
        compiler_params=pltpu.CompilerParams(
            dimension_semantics=("parallel",),
            vmem_limit_bytes=vmem_limit,
        ),
    )(xp, w1_t, b1, w2_t, b2)

    return out


# ----------------------------- reference (pure JAX) --------------------------
def _ref_down(x, w1, g1, be1, m1, v1, w2, g2, be2, m2, v2, eps=1e-5):
    N, Cin, L = x.shape
    xp = jnp.max(x.reshape(N, Cin, L // 2, 2), axis=-1)

    def conv(a, w):
        return jax.lax.conv_general_dilated(
            a, w, window_strides=(1,), padding=((1, 1),),
            dimension_numbers=("NCH", "OIH", "NCH"))

    def bn_relu(a, g, be, m, v):
        s = g / jnp.sqrt(v + eps)
        return jnp.maximum(a * s[None, :, None] + (be - m * s)[None, :, None], 0.0)

    h = bn_relu(conv(xp, w1), g1, be1, m1, v1)
    return bn_relu(conv(h, w2), g2, be2, m2, v2)


if __name__ == "__main__":
    N, C_in, C_out, L = 2, 4, 8, 16
    C_mid = C_out          # DoubleConv default: mid_channels = out_channels
    eps = 1e-5

    key = jax.random.PRNGKey(0)
    ks = jax.random.split(key, 11)

    x = jax.random.normal(ks[0], (N, C_in, L), jnp.float32)

    # Conv weights in PyTorch layout (Cout, Cin, K=3), no bias.
    w1 = jax.random.normal(ks[1], (C_mid, C_in, 3), jnp.float32) / (C_in * 3) ** 0.5
    w2 = jax.random.normal(ks[2], (C_out, C_mid, 3), jnp.float32) / (C_mid * 3) ** 0.5

    # BatchNorm parameters / running stats (deterministic, non-trivial).
    g1 = 1.0 + 0.1 * jax.random.normal(ks[3], (C_mid,), jnp.float32)
    be1 = 0.1 * jax.random.normal(ks[4], (C_mid,), jnp.float32)
    m1 = 0.1 * jax.random.normal(ks[5], (C_mid,), jnp.float32)
    v1 = jax.random.uniform(ks[6], (C_mid,), jnp.float32, minval=0.5, maxval=1.5)
    g2 = 1.0 + 0.1 * jax.random.normal(ks[7], (C_out,), jnp.float32)
    be2 = 0.1 * jax.random.normal(ks[8], (C_out,), jnp.float32)
    m2 = 0.1 * jax.random.normal(ks[9], (C_out,), jnp.float32)
    v2 = jax.random.uniform(ks[10], (C_out,), jnp.float32, minval=0.5, maxval=1.5)

    out = down_pallas(x, w1, g1, be1, m1, v1, w2, g2, be2, m2, v2, eps=eps)
    out = jax.block_until_ready(out)

    ref = _ref_down(x, w1, g1, be1, m1, v1, w2, g2, be2, m2, v2, eps=eps)
    assert out.shape == (N, C_out, L // 2), out.shape
    # bf16 matmul operands (f32 accumulation) -> loosened tolerance vs f32 ref.
    err = float(jnp.max(jnp.abs(out - ref)))
    assert jnp.allclose(out, ref, atol=5e-2, rtol=5e-2), err

    print("KERNEL_OK")
</pallas_src>

<mosaic_0001>
module attributes {stable_mosaic.version = 11 : i64} {
  func.func @down_kernel(%arg0: i32, %arg1: memref<1x4x8xbf16, #tpu.memory_space<vmem>>, %arg2: memref<3x8x4xbf16, #tpu.memory_space<vmem>>, %arg3: memref<8x1xf32, #tpu.memory_space<vmem>>, %arg4: memref<3x8x8xbf16, #tpu.memory_space<vmem>>, %arg5: memref<8x1xf32, #tpu.memory_space<vmem>>, %arg6: memref<1x8x8xf32, #tpu.memory_space<vmem>>) attributes {dimension_semantics = [#tpu.dimension_semantics<parallel>], iteration_bounds = array<i64: 2>, scalar_prefetch = 0 : i64, scratch_operands = 0 : i64, tpu.core_type = #tpu.core_type<tc>, window_params = [{transform_indices = @transform_0, window_bounds = array<i64: 1, 4, 8>}, {pipeline_mode = #tpu.pipeline_mode<synchronous>, transform_indices = @transform_1, window_bounds = array<i64: 3, 8, 4>}, {pipeline_mode = #tpu.pipeline_mode<synchronous>, transform_indices = @transform_2, window_bounds = array<i64: 8, 1>}, {pipeline_mode = #tpu.pipeline_mode<synchronous>, transform_indices = @transform_3, window_bounds = array<i64: 3, 8, 8>}, {pipeline_mode = #tpu.pipeline_mode<synchronous>, transform_indices = @transform_4, window_bounds = array<i64: 8, 1>}, {transform_indices = @transform_5, window_bounds = array<i64: 1, 8, 8>}]} {
    %0 = tpu.iota {dimensions = array<i32: 1>} : vector<1x8xi32>
    %c0_i32 = arith.constant 0 : i32
    %1 = vector.broadcast %c0_i32 : i32 to vector<1x8xi32>
    %2 = arith.cmpi eq, %0, %1 : vector<1x8xi32>
    %c7_i32 = arith.constant 7 : i32
    %3 = vector.broadcast %c7_i32 : i32 to vector<1x8xi32>
    %4 = arith.cmpi eq, %0, %3 : vector<1x8xi32>
    %c0 = arith.constant 0 : index
    %c0_0 = arith.constant 0 : index
    %c0_1 = arith.constant 0 : index
    %5 = vector.load %arg1[%c0, %c0_0, %c0_1] : memref<1x4x8xbf16, #tpu.memory_space<vmem>>, vector<1x4x8xbf16>
    %6 = vector.shape_cast %5 : vector<1x4x8xbf16> to vector<4x8xbf16>
    %7 = vector.extract_strided_slice %6 {offsets = [0, 7], sizes = [4, 1], strides = [1, 1]} : vector<4x8xbf16> to vector<4x1xbf16>
    %8 = vector.extract_strided_slice %6 {offsets = [0, 0], sizes = [4, 7], strides = [1, 1]} : vector<4x8xbf16> to vector<4x7xbf16>
    %9 = tpu.concatenate %7, %8 in 1 : vector<4x1xbf16>, vector<4x7xbf16> -> vector<4x8xbf16>
    %cst = arith.constant 0.000000e+00 : bf16
    %10 = vector.shape_cast %2 : vector<1x8xi1> to vector<1x8xi1>
    %11 = vector.broadcast %10 : vector<1x8xi1> to vector<4x8xi1>
    %12 = vector.broadcast %cst : bf16 to vector<4x8xbf16>
    %13 = arith.select %11, %12, %9 : vector<4x8xi1>, vector<4x8xbf16>
    %14 = vector.extract_strided_slice %6 {offsets = [0, 1], sizes = [4, 7], strides = [1, 1]} : vector<4x8xbf16> to vector<4x7xbf16>
    %15 = vector.extract_strided_slice %6 {offsets = [0, 0], sizes = [4, 1], strides = [1, 1]} : vector<4x8xbf16> to vector<4x1xbf16>
    %16 = tpu.concatenate %14, %15 in 1 : vector<4x7xbf16>, vector<4x1xbf16> -> vector<4x8xbf16>
    %cst_2 = arith.constant 0.000000e+00 : bf16
    %17 = vector.shape_cast %4 : vector<1x8xi1> to vector<1x8xi1>
    %18 = vector.broadcast %17 : vector<1x8xi1> to vector<4x8xi1>
    %19 = vector.broadcast %cst_2 : bf16 to vector<4x8xbf16>
    %20 = arith.select %18, %19, %16 : vector<4x8xi1>, vector<4x8xbf16>
    %c1 = arith.constant 1 : index
    %c0_3 = arith.constant 0 : index
    %c0_4 = arith.constant 0 : index
    %21 = vector.load %arg2[%c1, %c0_3, %c0_4] : memref<3x8x4xbf16, #tpu.memory_space<vmem>>, vector<1x8x4xbf16>
    %22 = vector.shape_cast %21 : vector<1x8x4xbf16> to vector<8x4xbf16>
    %cst_5 = arith.constant dense<0.000000e+00> : vector<8x8xf32>
    %23 = tpu.matmul %22, %6, %cst_5 {dimension_numbers = #tpu.dot_dimension_numbers<[1], [0], [0], [1], [0, 0, 1, 1], [], []>} : vector<8x4xbf16>, vector<4x8xbf16>, vector<8x8xf32> -> vector<8x8xf32>
    %c0_6 = arith.constant 0 : index
    %c0_7 = arith.constant 0 : index
    %c0_8 = arith.constant 0 : index
    %24 = vector.load %arg2[%c0_6, %c0_7, %c0_8] : memref<3x8x4xbf16, #tpu.memory_space<vmem>>, vector<1x8x4xbf16>
    %25 = vector.shape_cast %24 : vector<1x8x4xbf16> to vector<8x4xbf16>
    %cst_9 = arith.constant dense<0.000000e+00> : vector<8x8xf32>
    %26 = tpu.matmul %25, %13, %cst_9 {dimension_numbers = #tpu.dot_dimension_numbers<[1], [0], [0], [1], [0, 0, 1, 1], [], []>} : vector<8x4xbf16>, vector<4x8xbf16>, vector<8x8xf32> -> vector<8x8xf32>
    %27 = arith.addf %23, %26 : vector<8x8xf32>
    %c2 = arith.constant 2 : index
    %c0_10 = arith.constant 0 : index
    %c0_11 = arith.constant 0 : index
    %28 = vector.load %arg2[%c2, %c0_10, %c0_11] : memref<3x8x4xbf16, #tpu.memory_space<vmem>>, vector<1x8x4xbf16>
    %29 = vector.shape_cast %28 : vector<1x8x4xbf16> to vector<8x4xbf16>
    %cst_12 = arith.constant dense<0.000000e+00> : vector<8x8xf32>
    %30 = tpu.matmul %29, %20, %cst_12 {dimension_numbers = #tpu.dot_dimension_numbers<[1], [0], [0], [1], [0, 0, 1, 1], [], []>} : vector<8x4xbf16>, vector<4x8xbf16>, vector<8x8xf32> -> vector<8x8xf32>
    %31 = arith.addf %27, %30 : vector<8x8xf32>
    %c0_13 = arith.constant 0 : index
    %c0_14 = arith.constant 0 : index
    %32 = vector.load %arg3[%c0_13, %c0_14] : memref<8x1xf32, #tpu.memory_space<vmem>>, vector<8x1xf32>
    %33 = vector.broadcast %32 : vector<8x1xf32> to vector<8x8xf32>
    %34 = arith.addf %31, %33 : vector<8x8xf32>
    %cst_15 = arith.constant 0.000000e+00 : f32
    %35 = vector.broadcast %cst_15 : f32 to vector<8x8xf32>
    %36 = arith.maximumf %34, %35 : vector<8x8xf32>
    %37 = arith.truncf %36 : vector<8x8xf32> to vector<8x8xbf16>
    %38 = vector.extract_strided_slice %37 {offsets = [0, 7], sizes = [8, 1], strides = [1, 1]} : vector<8x8xbf16> to vector<8x1xbf16>
    %39 = vector.extract_strided_slice %37 {offsets = [0, 0], sizes = [8, 7], strides = [1, 1]} : vector<8x8xbf16> to vector<8x7xbf16>
    %40 = tpu.concatenate %38, %39 in 1 : vector<8x1xbf16>, vector<8x7xbf16> -> vector<8x8xbf16>
    %cst_16 = arith.constant 0.000000e+00 : bf16
    %41 = vector.shape_cast %2 : vector<1x8xi1> to vector<1x8xi1>
    %42 = vector.broadcast %41 : vector<1x8xi1> to vector<8x8xi1>
    %43 = vector.broadcast %cst_16 : bf16 to vector<8x8xbf16>
    %44 = arith.select %42, %43, %40 : vector<8x8xi1>, vector<8x8xbf16>
    %45 = vector.extract_strided_slice %37 {offsets = [0, 1], sizes = [8, 7], strides = [1, 1]} : vector<8x8xbf16> to vector<8x7xbf16>
    %46 = vector.extract_strided_slice %37 {offsets = [0, 0], sizes = [8, 1], strides = [1, 1]} : vector<8x8xbf16> to vector<8x1xbf16>
    %47 = tpu.concatenate %45, %46 in 1 : vector<8x7xbf16>, vector<8x1xbf16> -> vector<8x8xbf16>
    %cst_17 = arith.constant 0.000000e+00 : bf16
    %48 = vector.shape_cast %4 : vector<1x8xi1> to vector<1x8xi1>
    %49 = vector.broadcast %48 : vector<1x8xi1> to vector<8x8xi1>
    %50 = vector.broadcast %cst_17 : bf16 to vector<8x8xbf16>
    %51 = arith.select %49, %50, %47 : vector<8x8xi1>, vector<8x8xbf16>
    %c1_18 = arith.constant 1 : index
    %c0_19 = arith.constant 0 : index
    %c0_20 = arith.constant 0 : index
    %52 = vector.load %arg4[%c1_18, %c0_19, %c0_20] : memref<3x8x8xbf16, #tpu.memory_space<vmem>>, vector<1x8x8xbf16>
    %53 = vector.shape_cast %52 : vector<1x8x8xbf16> to vector<8x8xbf16>
    %cst_21 = arith.constant dense<0.000000e+00> : vector<8x8xf32>
    %54 = tpu.matmul %53, %37, %cst_21 {dimension_numbers = #tpu.dot_dimension_numbers<[1], [0], [0], [1], [0, 0, 1, 1], [], []>} : vector<8x8xbf16>, vector<8x8xbf16>, vector<8x8xf32> -> vector<8x8xf32>
    %c0_22 = arith.constant 0 : index
    %c0_23 = arith.constant 0 : index
    %c0_24 = arith.constant 0 : index
    %55 = vector.load %arg4[%c0_22, %c0_23, %c0_24] : memref<3x8x8xbf16, #tpu.memory_space<vmem>>, vector<1x8x8xbf16>
    %56 = vector.shape_cast %55 : vector<1x8x8xbf16> to vector<8x8xbf16>
    %cst_25 = arith.constant dense<0.000000e+00> : vector<8x8xf32>
    %57 = tpu.matmul %56, %44, %cst_25 {dimension_numbers = #tpu.dot_dimension_numbers<[1], [0], [0], [1], [0, 0, 1, 1], [], []>} : vector<8x8xbf16>, vector<8x8xbf16>, vector<8x8xf32> -> vector<8x8xf32>
    %58 = arith.addf %54, %57 : vector<8x8xf32>
    %c2_26 = arith.constant 2 : index
    %c0_27 = arith.constant 0 : index
    %c0_28 = arith.constant 0 : index
    %59 = vector.load %arg4[%c2_26, %c0_27, %c0_28] : memref<3x8x8xbf16, #tpu.memory_space<vmem>>, vector<1x8x8xbf16>
    %60 = vector.shape_cast %59 : vector<1x8x8xbf16> to vector<8x8xbf16>
    %cst_29 = arith.constant dense<0.000000e+00> : vector<8x8xf32>
    %61 = tpu.matmul %60, %51, %cst_29 {dimension_numbers = #tpu.dot_dimension_numbers<[1], [0], [0], [1], [0, 0, 1, 1], [], []>} : vector<8x8xbf16>, vector<8x8xbf16>, vector<8x8xf32> -> vector<8x8xf32>
    %62 = arith.addf %58, %61 : vector<8x8xf32>
    %c0_30 = arith.constant 0 : index
    %c0_31 = arith.constant 0 : index
    %63 = vector.load %arg5[%c0_30, %c0_31] : memref<8x1xf32, #tpu.memory_space<vmem>>, vector<8x1xf32>
    %64 = vector.broadcast %63 : vector<8x1xf32> to vector<8x8xf32>
    %65 = arith.addf %62, %64 : vector<8x8xf32>
    %cst_32 = arith.constant 0.000000e+00 : f32
    %66 = vector.broadcast %cst_32 : f32 to vector<8x8xf32>
    %67 = arith.maximumf %65, %66 : vector<8x8xf32>
    %c0_33 = arith.constant 0 : index
    %c0_34 = arith.constant 0 : index
    %c0_35 = arith.constant 0 : index
    %68 = vector.load %arg6[%c0_33, %c0_34, %c0_35] : memref<1x8x8xf32, #tpu.memory_space<vmem>>, vector<1x8x8xf32>
    %69 = vector.shape_cast %68 : vector<1x8x8xf32> to vector<8x8xf32>
    %70 = vector.shape_cast %67 : vector<8x8xf32> to vector<1x8x8xf32>
    tpu.vector_store %arg6[%c0_33, %c0_34, %c0_35], %70 {strides = array<i32>} : memref<1x8x8xf32, #tpu.memory_space<vmem>>, vector<1x8x8xf32>,
    return
  }
  func.func @transform_0(%arg0: i32) -> (i32, i32, i32) {
    %c0_i32 = arith.constant 0 : i32
    %c0_i32_0 = arith.constant 0 : i32
    %c0_i32_1 = arith.constant 0 : i32
    return %arg0, %c0_i32, %c0_i32_0 : i32, i32, i32
  }
  func.func @transform_1(%arg0: i32) -> (i32, i32, i32) {
    %c0_i32 = arith.constant 0 : i32
    %c0_i32_0 = arith.constant 0 : i32
    %c0_i32_1 = arith.constant 0 : i32
    %c0_i32_2 = arith.constant 0 : i32
    return %c0_i32, %c0_i32_0, %c0_i32_1 : i32, i32, i32
  }
  func.func @transform_2(%arg0: i32) -> (i32, i32) {
    %c0_i32 = arith.constant 0 : i32
    %c0_i32_0 = arith.constant 0 : i32
    %c0_i32_1 = arith.constant 0 : i32
    return %c0_i32, %c0_i32_0 : i32, i32
  }
  func.func @transform_3(%arg0: i32) -> (i32, i32, i32) {
    %c0_i32 = arith.constant 0 : i32
    %c0_i32_0 = arith.constant 0 : i32
    %c0_i32_1 = arith.constant 0 : i32
    %c0_i32_2 = arith.constant 0 : i32
    return %c0_i32, %c0_i32_0, %c0_i32_1 : i32, i32, i32
  }
  func.func @transform_4(%arg0: i32) -> (i32, i32) {
    %c0_i32 = arith.constant 0 : i32
    %c0_i32_0 = arith.constant 0 : i32
    %c0_i32_1 = arith.constant 0 : i32
    return %c0_i32, %c0_i32_0 : i32, i32
  }
  func.func @transform_5(%arg0: i32) -> (i32, i32, i32) {
    %c0_i32 = arith.constant 0 : i32
    %c0_i32_0 = arith.constant 0 : i32
    %c0_i32_1 = arith.constant 0 : i32
    return %arg0, %c0_i32, %c0_i32_0 : i32, i32, i32
  }
}

</mosaic_0001>

<llo_original>
// kernel: tpu_custom_call.1
$region0: #{tpu_custom_call.1}
  #allocation0 [shape = 'u32[]', space=smem, size = 0x4, offset = 0x4, fixed_abs, tag = 'smem constant byte address 0x4 - core index']
  #allocation1 [shape = 'u32[144,128]{1,0:T(1,128)}', space=vmem, size = 0x12000, scoped, tag = 'internal scratch']
  %s0 = inlined_call_operand.vmem [shape: bf16[2,4,8], index: 0, kind: input, shape index: {}]
  %s1 = inlined_call_operand.vmem [shape: bf16[3,8,4], index: 1, kind: input, shape index: {}]
  %s2 = inlined_call_operand.vmem [shape: f32[8,1], index: 2, kind: input, shape index: {}]
  %s3 = inlined_call_operand.vmem [shape: bf16[3,8,8], index: 3, kind: input, shape index: {}]
  %s4 = inlined_call_operand.vmem [shape: f32[8,1], index: 4, kind: input, shape index: {}]
  %s5 = inlined_call_operand.hbm [shape: f32[2,8,8], index: 5, kind: output, shape index: {}]
  %s6 = sld [smem:[#allocation0]]
  $region53: #{tpu_custom_call.1} parent=0
    _
  %s8 = ssub.s32 1, %s6
  %s9 = scalar_select 0, %s8, %s6
  $region1: #{tpu_custom_call.1} parent=0
    #allocation2 [shape = 'u8[8192]{0}', space=vmem, size = 0x2000, scoped, tag = 'output window, operand 0']
    #allocation3 [shape = 's32[2]{0}', space=sflag, size = 0x8, scoped, tag = 'scoped memory for tpu_custom_call.1']
    %10 = vsyncpa [#allocation3], 0
    %s11 = scalar_lea.sflag [#allocation3], 1
    %12 = vsyncpa %s11, 0
    loop: start=0, step=1, limit=4
    $region2: #{tpu_custom_call.1} parent=1 // loop_pre_header
      _
    $region3: #{tpu_custom_call.1} parent=1 // loop_header
      %s14 = sphi 0, %s18
      %p15 = scmp.ge.s32.totalorder %s14, 4
      %s24 = sphi 0, %s26
      %s27 = sphi 0, %s24
      %s28 = sphi 0, %s27
      %s44 = sphi 0, %s28
      %s48 = sphi 0, %s48
      %s50 = sphi 0, %s48
      %s51 = sphi 0, %s50
      %s65 = sphi 0, %s51
      %s69 = sphi 0, %s69
      %s71 = sphi 0, %s69
      %s72 = sphi 0, %s71
      %s86 = sphi 0, %s72
      %s90 = sphi 0, %s90
      %s92 = sphi 0, %s90
      %s93 = sphi 0, %s92
      %s107 = sphi 0, %s93
      %s111 = sphi 0, %s111
      %s113 = sphi 0, %s111
      %s114 = sphi 0, %s113
      %s128 = sphi 0, %s114
      %s134 = sphi 0, %s136
      %s137 = sphi 0, %s134
      %s138 = sphi 0, %s137
      %s154 = sphi 0, %s138
    $region4: #{tpu_custom_call.1} parent=1 // loop_header_branch
      %17 = sbr.rel (%p15) target = $region8
    $region5: #{tpu_custom_call.1} parent=1 // loop_body
      %s19 = ssub.s32 %s14, 1
      %s20 = ssub.s32 %s14, 2
      %s21 = sadd.s32 %s14, 1
      %s22 = ssub.s32 %s14, %s21
      %p23 = scmp.eq.s32.totalorder %s22, 0
      %s25 = sadd.s32 %s24, 1
      %s26 = scalar_select %p23, %s24, %s25
      %p29 = pneg %p23
      %p30 = scmp.eq.s32.totalorder %s14, 1
      %p31 = por %p29, %p30
      %p32 = scmp.ne.s32.totalorder %s24, %s27
      %p33 = scmp.eq.s32.totalorder %s14, 0
      %p34 = por %p32, %p33
      %p35 = scmp.ne.s32.totalorder %s24, %s27
      %p36 = scmp.eq.s32.totalorder %s19, 1
      %p37 = por %p35, %p36
      %p38 = scmp.ne.s32.totalorder %s27, %s28
      %p39 = scmp.eq.s32.totalorder %s19, 0
      %p40 = por %p38, %p39
      %p41 = scmp.ne.s32.totalorder %s27, %s28
      %p42 = scmp.eq.s32.totalorder %s20, 1
      %p43 = por %p41, %p42
      %p45 = scmp.ne.s32.totalorder %s28, %s44
      %p46 = scmp.eq.s32.totalorder %s20, 0
      %p47 = por %p45, %p46
      %s49 = sadd.s32 %s48, 1
      %p52 = scmp.eq.s32.totalorder %s14, 1
      %p53 = scmp.ne.s32.totalorder %s48, %s50
      %p54 = scmp.eq.s32.totalorder %s14, 0
      %p55 = por %p53, %p54
      %p56 = scmp.ne.s32.totalorder %s48, %s50
      %p57 = scmp.eq.s32.totalorder %s19, 1
      %p58 = por %p56, %p57
      %p59 = scmp.ne.s32.totalorder %s50, %s51
      %p60 = scmp.eq.s32.totalorder %s19, 0
      %p61 = por %p59, %p60
      %p62 = scmp.ne.s32.totalorder %s50, %s51
      %p63 = scmp.eq.s32.totalorder %s20, 1
      %p64 = por %p62, %p63
      %p66 = scmp.ne.s32.totalorder %s51, %s65
      %p67 = scmp.eq.s32.totalorder %s20, 0
      %p68 = por %p66, %p67
      %s70 = sadd.s32 %s69, 1
      %p73 = scmp.eq.s32.totalorder %s14, 1
      %p74 = scmp.ne.s32.totalorder %s69, %s71
      %p75 = scmp.eq.s32.totalorder %s14, 0
      %p76 = por %p74, %p75
      %p77 = scmp.ne.s32.totalorder %s69, %s71
      %p78 = scmp.eq.s32.totalorder %s19, 1
      %p79 = por %p77, %p78
      %p80 = scmp.ne.s32.totalorder %s71, %s72
      %p81 = scmp.eq.s32.totalorder %s19, 0
      %p82 = por %p80, %p81
      %p83 = scmp.ne.s32.totalorder %s71, %s72
      %p84 = scmp.eq.s32.totalorder %s20, 1
      %p85 = por %p83, %p84
      %p87 = scmp.ne.s32.totalorder %s72, %s86
      %p88 = scmp.eq.s32.totalorder %s20, 0
      %p89 = por %p87, %p88
      %s91 = sadd.s32 %s90, 1
      %p94 = scmp.eq.s32.totalorder %s14, 1
      %p95 = scmp.ne.s32.totalorder %s90, %s92
      %p96 = scmp.eq.s32.totalorder %s14, 0
      %p97 = por %p95, %p96
      %p98 = scmp.ne.s32.totalorder %s90, %s92
      %p99 = scmp.eq.s32.totalorder %s19, 1
      %p100 = por %p98, %p99
      %p101 = scmp.ne.s32.totalorder %s92, %s93
      %p102 = scmp.eq.s32.totalorder %s19, 0
      %p103 = por %p101, %p102
      %p104 = scmp.ne.s32.totalorder %s92, %s93
      %p105 = scmp.eq.s32.totalorder %s20, 1
      %p106 = por %p104, %p105
      %p108 = scmp.ne.s32.totalorder %s93, %s107
      %p109 = scmp.eq.s32.totalorder %s20, 0
      %p110 = por %p108, %p109
      %s112 = sadd.s32 %s111, 1
      %p115 = scmp.eq.s32.totalorder %s14, 1
      %p116 = scmp.ne.s32.totalorder %s111, %s113
      %p117 = scmp.eq.s32.totalorder %s14, 0
      %p118 = por %p116, %p117
      %p119 = scmp.ne.s32.totalorder %s111, %s113
      %p120 = scmp.eq.s32.totalorder %s19, 1
      %p121 = por %p119, %p120
      %p122 = scmp.ne.s32.totalorder %s113, %s114
      %p123 = scmp.eq.s32.totalorder %s19, 0
      %p124 = por %p122, %p123
      %p125 = scmp.ne.s32.totalorder %s113, %s114
      %p126 = scmp.eq.s32.totalorder %s20, 1
      %p127 = por %p125, %p126
      %p129 = scmp.ne.s32.totalorder %s114, %s128
      %p130 = scmp.eq.s32.totalorder %s20, 0
      %p131 = por %p129, %p130
      %s132 = ssub.s32 %s14, %s21
      %p133 = scmp.eq.s32.totalorder %s132, 0
      %s135 = sadd.s32 %s134, 1
      %s136 = scalar_select %p133, %s134, %s135
      %p139 = pneg %p133
      %p140 = scmp.eq.s32.totalorder %s14, 1
      %p141 = por %p139, %p140
      %p142 = scmp.ne.s32.totalorder %s134, %s137
      %p143 = scmp.eq.s32.totalorder %s14, 0
      %p144 = por %p142, %p143
      %p145 = scmp.ne.s32.totalorder %s134, %s137
      %p146 = scmp.eq.s32.totalorder %s19, 1
      %p147 = por %p145, %p146
      %p148 = scmp.ne.s32.totalorder %s137, %s138
      %p149 = scmp.eq.s32.totalorder %s19, 0
      %p150 = por %p148, %p149
      %p151 = scmp.ne.s32.totalorder %s137, %s138
      %p152 = scmp.eq.s32.totalorder %s20, 1
      %p153 = por %p151, %p152
      %p155 = scmp.ne.s32.totalorder %s138, %s154
      %p156 = scmp.eq.s32.totalorder %s20, 0
      %p157 = por %p155, %p156
      %p158 = scmp.le.s32.totalorder 1, %s14
      %p159 = scmp.lt.s32.totalorder %s14, 3
      %p160 = pnand %p158, %p159
      %p161 = pneg %p160
      // Predicated region
      $region9: #{tpu_custom_call.1} parent=5 // pred_check
        _
      $region10: #{tpu_custom_call.1} parent=5 // pred_check_branch
        %163 = sbr.rel (%p160) target = $region12
      $region11: #{tpu_custom_call.1} parent=5 // pred_region
        %s164 = ssub.s32 %s14, 1
        // Predicated region
        $region13: #{tpu_custom_call.1} parent=11 // pred_check
          %p165 = pneg %p61
        $region14: #{tpu_custom_call.1} parent=11 // pred_check_branch
          %167 = sbr.rel (%p165) target = $region16
        $region15: #{tpu_custom_call.1} parent=11 // pred_region
          _
        $region16: #{tpu_custom_call.1} parent=11 // pred_fallthru
          _
        // Predicated region
        $region17: #{tpu_custom_call.1} parent=11 // pred_check
          %p168 = pneg %p82
        $region18: #{tpu_custom_call.1} parent=11 // pred_check_branch
          %170 = sbr.rel (%p168) target = $region20
        $region19: #{tpu_custom_call.1} parent=11 // pred_region
          _
        $region20: #{tpu_custom_call.1} parent=11 // pred_fallthru
          _
        // Predicated region
        $region21: #{tpu_custom_call.1} parent=11 // pred_check
          %p171 = pneg %p103
        $region22: #{tpu_custom_call.1} parent=11 // pred_check_branch
          %173 = sbr.rel (%p171) target = $region24
        $region23: #{tpu_custom_call.1} parent=11 // pred_region
          _
        $region24: #{tpu_custom_call.1} parent=11 // pred_fallthru
          _
        // Predicated region
        $region25: #{tpu_custom_call.1} parent=11 // pred_check
          %p174 = pneg %p124
        $region26: #{tpu_custom_call.1} parent=11 // pred_check_branch
          %176 = sbr.rel (%p174) target = $region28
        $region27: #{tpu_custom_call.1} parent=11 // pred_region
          _
        $region28: #{tpu_custom_call.1} parent=11 // pred_fallthru
          _
      $region12: #{tpu_custom_call.1} parent=5 // pred_fallthru
        _
      %p177 = scmp.lt.s32.totalorder %s14, 2
      // Predicated region
      $region29: #{tpu_custom_call.1} parent=5 // pred_check
        %p178 = pneg %p177
      $region30: #{tpu_custom_call.1} parent=5 // pred_check_branch
        %180 = sbr.rel (%p178) target = $region32
      $region31: #{tpu_custom_call.1} parent=5 // pred_region
        // Predicated region
        $region33: #{tpu_custom_call.1} parent=31 // pred_check
          %p181 = pneg %p34
        $region34: #{tpu_custom_call.1} parent=31 // pred_check_branch
          %183 = sbr.rel (%p181) target = $region36
        $region35: #{tpu_custom_call.1} parent=31 // pred_region
          %p184 = scmp.lt.s32.totalorder %s14, 1
          %s185 = scalar_select %p184, %s14, 1
          %s186 = smul.addr %s185, 2
          %s187 = scalar_lea.vmem %s0, %s186
        $region36: #{tpu_custom_call.1} parent=31 // pred_fallthru
          _
      $region32: #{tpu_custom_call.1} parent=5 // pred_fallthru
        _
      %p188 = scmp.le.s32.totalorder 1, %s14
      %p189 = scmp.lt.s32.totalorder %s14, 3
      %p190 = pnand %p188, %p189
      %p191 = pneg %p190
      // Predicated region
      $region37: #{tpu_custom_call.1} parent=5 // pred_check
        _
      $region38: #{tpu_custom_call.1} parent=5 // pred_check_branch
        %193 = sbr.rel (%p190) target = $region40
      $region39: #{tpu_custom_call.1} parent=5 // pred_region
        %s194 = ssub.s32 %s14, 1
        %p195 = scmp.lt.s32.totalorder %s19, 1
        %s196 = scalar_select %p195, %s19, 1
        %s197 = smul.addr %s196, 2
        %s198 = scalar_lea.vmem %s0, %s197
        %p199 = pneg %p40
        %p200 = pneg %p37
        %p201 = pneg %p61
        %p202 = pneg %p58
        %p203 = pneg %p82
        %p204 = pneg %p79
        %p205 = pneg %p103
        %p206 = pneg %p100
        %p207 = pneg %p124
        %p208 = pneg %p121
        %p209 = pneg %p150
        %p210 = pneg %p147
        %s211 = sand.u32 %s137, 1
        %s212 = scalar_lea.sflag [#allocation3], %s211
        %s213 = sand.u32 %s137, 1
        %s214 = smul.addr %s213, 8
        %s215 = scalar_lea.vmem [#allocation2], %s214
        %p216 = scmp.lt.s32.totalorder %s19, 1
        %s217 = scalar_select %p216, %s19, 1
        %s218 = smul.addr %s217, 2
        %s219 = scalar_lea.vmem %s0, %s218
        %v221 = vlaneseq
        %v222 = vand.u32 %v221, 127
        %vm223 = vcmp.eq.s32.totalorder %v222, 0
        %vm224 = vcmp.eq.s32.totalorder %v222, 7
        %v225 = vld [vmem:[%s219] sm:$0x3]
        %v228 = vunpack.c.l.s4 1983009808
        %v229 = vunpack.c.0.s8 %v228
        %v230 = vlaneseq
        %v231 = vshrl.u32 %v230, 7
        %v232 = vsub.s32 %v229, %v231
        %v233 = vrot.slane %v225, %v232
        %234 = vrot.lane.b32.xlu0 %v233, 121
        %v235 = vpop.permute.xlu0 %234
        %236 = vrot.lane.b32.xlu0 %v233, 1
        %v237 = vpop.permute.xlu0 %236
        %vm238 = vcmask 7168
        %v241 = vsel %vm238, %v235, %v237
        %v243 = vsel %vm223, 1, 0
        %vm244 = vcmp.eq.s32.totalorder %v243, 1
        %vm245 = vmpackc.low %vm244, %vm244
        %v246 = vsel %vm245, 0, %v241
        %247 = vrot.lane.b32.xlu0 %v233, 127
        %v248 = vpop.permute.xlu0 %247
        %249 = vrot.lane.b32.xlu0 %v233, 7
        %v250 = vpop.permute.xlu0 %249
        %vm251 = vcmask 56320
        %v254 = vsel %vm251, %v248, %v250
        %v256 = vsel %vm224, 1, 0
        %vm257 = vcmp.eq.s32.totalorder %v256, 1
        %vm258 = vmpackc.low %vm257, %vm257
        %v259 = vsel %vm258, 0, %v254
        %s260 = scalar_lea.vmem %s1, 4
        %v261 = vld [vmem:[%s260] sm:$0xf]
        %v262 = vld [vmem:[%s1] sm:$0xf]
        %vm263 = vcmask 31744
        %v265 = vsel %vm263, %v262, 0
        %vm267 = vcmask 1041408
        %v269 = vsel %vm267, %v246, 0
        %271 = vmatprep.subr.bf16.mxu0 0
        %272 = vmatpush1.bf16.msra.mxu0 %v269
        %273 = vmatprep.subr.bf16.mxu0 0
        %274 = vmatpush1.bf16.msra.mxu0 0
        %275 = vmatprep.subr.bf16.mxu0 0
        %276 = vmatpush1.bf16.msra.mxu0 0
        %277 = vmatprep.subr.bf16.mxu0 0
        %278 = vmatpush1.bf16.msra.mxu0 0
        %279 = vmatprep.subr.bf16.mxu0 0
        %280 = vmatpush1.bf16.msra.mxu0 0
        %281 = vmatprep.subr.bf16.mxu0 0
        %282 = vmatpush1.bf16.msra.mxu0 0
        %283 = vmatprep.subr.bf16.mxu0 0
        %284 = vmatpush1.bf16.msra.mxu0 0
        %285 = vmatprep.subr.bf16.mxu0 0
        %286 = vmatpush1.bf16.msra.mxu0 0
        %287 = vmatprep.subr.bf16.mxu0 0
        %288 = vmatpush1.bf16.msra.mxu0 0
        %289 = vmatprep.subr.bf16.mxu0 0
        %290 = vmatpush1.bf16.msra.mxu0 0
        %291 = vmatprep.subr.bf16.mxu0 0
        %292 = vmatpush1.bf16.msra.mxu0 0
        %293 = vmatprep.subr.bf16.mxu0 0
        %294 = vmatpush1.bf16.msra.mxu0 0
        %295 = vmatprep.subr.bf16.mxu0 0
        %296 = vmatpush1.bf16.msra.mxu0 0
        %297 = vmatprep.subr.bf16.mxu0 0
        %298 = vmatpush1.bf16.msra.mxu0 0
        %299 = vmatprep.subr.bf16.mxu0 0
        %300 = vmatpush1.bf16.msra.mxu0 0
        %301 = vmatprep.subr.bf16.mxu0 0
        %302 = vmatpush1.bf16.msra.mxu0 0
        %303 = vmatprep.mubr.bf16.mxu0 0
        %304 = vmatmul.mubr.bf16.gmra.mrb[0].mxu0 %v265
        %v305 = vpop.f32.mrb[0].mxu0
        %v306 = vadd.f32 0.0, %v305
        %v307 = vpop.f32.mrb[0].mxu0
        %v308 = vpop.f32.mrb[0].mxu0
        %v309 = vpop.f32.mrb[0].mxu0
        %310 = vdwg.mxu0
        %v312 = vsel %vm263, %v261, 0
        %v315 = vsel %vm267, %v225, 0
        %317 = vmatprep.subr.bf16.mxu0 0
        %318 = vmatpush1.bf16.msra.mxu0 %v315
        %319 = vmatprep.subr.bf16.mxu0 0
        %320 = vmatpush1.bf16.msra.mxu0 0
        %321 = vmatprep.subr.bf16.mxu0 0
        %322 = vmatpush1.bf16.msra.mxu0 0
        %323 = vmatprep.subr.bf16.mxu0 0
        %324 = vmatpush1.bf16.msra.mxu0 0
        %325 = vmatprep.subr.bf16.mxu0 0
        %326 = vmatpush1.bf16.msra.mxu0 0
        %327 = vmatprep.subr.bf16.mxu0 0
        %328 = vmatpush1.bf16.msra.mxu0 0
        %329 = vmatprep.subr.bf16.mxu0 0
        %330 = vmatpush1.bf16.msra.mxu0 0
        %331 = vmatprep.subr.bf16.mxu0 0
        %332 = vmatpush1.bf16.msra.mxu0 0
        %333 = vmatprep.subr.bf16.mxu0 0
        %334 = vmatpush1.bf16.msra.mxu0 0
        %335 = vmatprep.subr.bf16.mxu0 0
        %336 = vmatpush1.bf16.msra.mxu0 0
        %337 = vmatprep.subr.bf16.mxu0 0
        %338 = vmatpush1.bf16.msra.mxu0 0
        %339 = vmatprep.subr.bf16.mxu0 0
        %340 = vmatpush1.bf16.msra.mxu0 0
        %341 = vmatprep.subr.bf16.mxu0 0
        %342 = vmatpush1.bf16.msra.mxu0 0
        %343 = vmatprep.subr.bf16.mxu0 0
        %344 = vmatpush1.bf16.msra.mxu0 0
        %345 = vmatprep.subr.bf16.mxu0 0
        %346 = vmatpush1.bf16.msra.mxu0 0
        %347 = vmatprep.subr.bf16.mxu0 0
        %348 = vmatpush1.bf16.msra.mxu0 0
        %349 = vmatprep.mubr.bf16.mxu0 0
        %350 = vmatmul.mubr.bf16.gmra.mrb[0].mxu0 %v312
        %v351 = vpop.f32.mrb[0].mxu0
        %v352 = vadd.f32 %v306, %v351
        %v353 = vpop.f32.mrb[0].mxu0
        %v354 = vpop.f32.mrb[0].mxu0
        %v355 = vpop.f32.mrb[0].mxu0
        %356 = vdwg.mxu0
        %s357 = scalar_lea.vmem %s1, 8
        %v358 = vld [vmem:[%s357] sm:$0xf]
        %v360 = vsel %vm263, %v358, 0
        %v363 = vsel %vm267, %v259, 0
        %365 = vmatprep.subr.bf16.mxu0 0
        %366 = vmatpush1.bf16.msra.mxu0 %v363
        %367 = vmatprep.subr.bf16.mxu0 0
        %368 = vmatpush1.bf16.msra.mxu0 0
        %369 = vmatprep.subr.bf16.mxu0 0
        %370 = vmatpush1.bf16.msra.mxu0 0
        %371 = vmatprep.subr.bf16.mxu0 0
        %372 = vmatpush1.bf16.msra.mxu0 0
        %373 = vmatprep.subr.bf16.mxu0 0
        %374 = vmatpush1.bf16.msra.mxu0 0
        %375 = vmatprep.subr.bf16.mxu0 0
        %376 = vmatpush1.bf16.msra.mxu0 0
        %377 = vmatprep.subr.bf16.mxu0 0
        %378 = vmatpush1.bf16.msra.mxu0 0
        %379 = vmatprep.subr.bf16.mxu0 0
        %380 = vmatpush1.bf16.msra.mxu0 0
        %381 = vmatprep.subr.bf16.mxu0 0
        %382 = vmatpush1.bf16.msra.mxu0 0
        %383 = vmatprep.subr.bf16.mxu0 0
        %384 = vmatpush1.bf16.msra.mxu0 0
        %385 = vmatprep.subr.bf16.mxu0 0
        %386 = vmatpush1.bf16.msra.mxu0 0
        %387 = vmatprep.subr.bf16.mxu0 0
        %388 = vmatpush1.bf16.msra.mxu0 0
        %389 = vmatprep.subr.bf16.mxu0 0
        %390 = vmatpush1.bf16.msra.mxu0 0
        %391 = vmatprep.subr.bf16.mxu0 0
        %392 = vmatpush1.bf16.msra.mxu0 0
        %393 = vmatprep.subr.bf16.mxu0 0
        %394 = vmatpush1.bf16.msra.mxu0 0
        %395 = vmatprep.subr.bf16.mxu0 0
        %396 = vmatpush1.bf16.msra.mxu0 0
        %397 = vmatprep.mubr.bf16.mxu0 0
        %398 = vmatmul.mubr.bf16.gmra.mrb[0].mxu0 %v360
        %v399 = vpop.f32.mrb[0].mxu0
        %v400 = vadd.f32 0.0, %v399
        %v401 = vpop.f32.mrb[0].mxu0
        %v402 = vpop.f32.mrb[0].mxu0
        %v403 = vpop.f32.mrb[0].mxu0
        %404 = vdwg.mxu0
        %v405 = vadd.f32 %v352, %v400
        %v406 = vld [vmem:[%s2] sm:$0xff]
        %408 = vset.pattern.permute.xlu0 0
        %409 = vperm.xlu0 %408, %v406
        %v410 = vpop.permute.xlu0 %409
        %v412 = vadd.f32 %v405, %v410
        %v413 = vmax.f32 %v412, 0.0
        %v414 = vpack.c.bf16 %v413, %v413
        %416 = vrot.lane.b32.xlu0 %v414, 121
        %v417 = vpop.permute.xlu0 %416
        %418 = vrot.lane.b32.xlu0 %v414, 1
        %v419 = vpop.permute.xlu0 %418
        %v422 = vsel %vm238, %v417, %v419
        %v424 = vsel %vm245, 0, %v422
        %425 = vrot.lane.b32.xlu0 %v414, 127
        %v426 = vpop.permute.xlu0 %425
        %427 = vrot.lane.b32.xlu0 %v414, 7
        %v428 = vpop.permute.xlu0 %427
        %v431 = vsel %vm251, %v426, %v428
        %v433 = vsel %vm258, 0, %v431
        %s434 = scalar_lea.vmem %s3, 4
        %v435 = vld [vmem:[%s434] sm:$0xf]
        %v436 = vld [vmem:[%s3] sm:$0xf]
        %vm437 = vcmask 64512
        %v439 = vsel %vm437, %v436, 0
        %vm441 = vcmask 1043456
        %v443 = vsel %vm441, %v424, 0
        %445 = vmatprep.subr.bf16.mxu0 0
        %446 = vmatpush1.bf16.msra.mxu0 %v443
        %447 = vmatprep.subr.bf16.mxu0 0
        %448 = vmatpush1.bf16.msra.mxu0 0
        %449 = vmatprep.subr.bf16.mxu0 0
        %450 = vmatpush1.bf16.msra.mxu0 0
        %451 = vmatprep.subr.bf16.mxu0 0
        %452 = vmatpush1.bf16.msra.mxu0 0
        %453 = vmatprep.subr.bf16.mxu0 0
        %454 = vmatpush1.bf16.msra.mxu0 0
        %455 = vmatprep.subr.bf16.mxu0 0
        %456 = vmatpush1.bf16.msra.mxu0 0
        %457 = vmatprep.subr.bf16.mxu0 0
        %458 = vmatpush1.bf16.msra.mxu0 0
        %459 = vmatprep.subr.bf16.mxu0 0
        %460 = vmatpush1.bf16.msra.mxu0 0
        %461 = vmatprep.subr.bf16.mxu0 0
        %462 = vmatpush1.bf16.msra.mxu0 0
        %463 = vmatprep.subr.bf16.mxu0 0
        %464 = vmatpush1.bf16.msra.mxu0 0
        %465 = vmatprep.subr.bf16.mxu0 0
        %466 = vmatpush1.bf16.msra.mxu0 0
        %467 = vmatprep.subr.bf16.mxu0 0
        %468 = vmatpush1.bf16.msra.mxu0 0
        %469 = vmatprep.subr.bf16.mxu0 0
        %470 = vmatpush1.bf16.msra.mxu0 0
        %471 = vmatprep.subr.bf16.mxu0 0
        %472 = vmatpush1.bf16.msra.mxu0 0
        %473 = vmatprep.subr.bf16.mxu0 0
        %474 = vmatpush1.bf16.msra.mxu0 0
        %475 = vmatprep.subr.bf16.mxu0 0
        %476 = vmatpush1.bf16.msra.mxu0 0
        %477 = vmatprep.mubr.bf16.mxu0 0
        %478 = vmatmul.mubr.bf16.gmra.mrb[0].mxu0 %v439
        %v479 = vpop.f32.mrb[0].mxu0
        %v480 = vadd.f32 0.0, %v479
        %v481 = vpop.f32.mrb[0].mxu0
        %v482 = vpop.f32.mrb[0].mxu0
        %v483 = vpop.f32.mrb[0].mxu0
        %484 = vdwg.mxu0
        %v486 = vsel %vm437, %v435, 0
        %v489 = vsel %vm441, %v414, 0
        %491 = vmatprep.subr.bf16.mxu0 0
        %492 = vmatpush1.bf16.msra.mxu0 %v489
        %493 = vmatprep.subr.bf16.mxu0 0
        %494 = vmatpush1.bf16.msra.mxu0 0
        %495 = vmatprep.subr.bf16.mxu0 0
        %496 = vmatpush1.bf16.msra.mxu0 0
        %497 = vmatprep.subr.bf16.mxu0 0
        %498 = vmatpush1.bf16.msra.mxu0 0
        %499 = vmatprep.subr.bf16.mxu0 0
        %500 = vmatpush1.bf16.msra.mxu0 0
        %501 = vmatprep.subr.bf16.mxu0 0
        %502 = vmatpush1.bf16.msra.mxu0 0
        %503 = vmatprep.subr.bf16.mxu0 0
        %504 = vmatpush1.bf16.msra.mxu0 0
        %505 = vmatprep.subr.bf16.mxu0 0
        %506 = vmatpush1.bf16.msra.mxu0 0
        %507 = vmatprep.subr.bf16.mxu0 0
        %508 = vmatpush1.bf16.msra.mxu0 0
        %509 = vmatprep.subr.bf16.mxu0 0
        %510 = vmatpush1.bf16.msra.mxu0 0
        %511 = vmatprep.subr.bf16.mxu0 0
        %512 = vmatpush1.bf16.msra.mxu0 0
        %513 = vmatprep.subr.bf16.mxu0 0
        %514 = vmatpush1.bf16.msra.mxu0 0
        %515 = vmatprep.subr.bf16.mxu0 0
        %516 = vmatpush1.bf16.msra.mxu0 0
        %517 = vmatprep.subr.bf16.mxu0 0
        %518 = vmatpush1.bf16.msra.mxu0 0
        %519 = vmatprep.subr.bf16.mxu0 0
        %520 = vmatpush1.bf16.msra.mxu0 0
        %521 = vmatprep.subr.bf16.mxu0 0
        %522 = vmatpush1.bf16.msra.mxu0 0
        %523 = vmatprep.mubr.bf16.mxu0 0
        %524 = vmatmul.mubr.bf16.gmra.mrb[0].mxu0 %v486
        %v525 = vpop.f32.mrb[0].mxu0
        %v526 = vadd.f32 %v480, %v525
        %v527 = vpop.f32.mrb[0].mxu0
        %v528 = vpop.f32.mrb[0].mxu0
        %v529 = vpop.f32.mrb[0].mxu0
        %530 = vdwg.mxu0
        %s531 = scalar_lea.vmem %s3, 8
        %v532 = vld [vmem:[%s531] sm:$0xf]
        %v534 = vsel %vm437, %v532, 0
        %v537 = vsel %vm441, %v433, 0
        %539 = vmatprep.subr.bf16.mxu0 0
        %540 = vmatpush1.bf16.msra.mxu0 %v537
        %541 = vmatprep.subr.bf16.mxu0 0
        %542 = vmatpush1.bf16.msra.mxu0 0
        %543 = vmatprep.subr.bf16.mxu0 0
        %544 = vmatpush1.bf16.msra.mxu0 0
        %545 = vmatprep.subr.bf16.mxu0 0
        %546 = vmatpush1.bf16.msra.mxu0 0
        %547 = vmatprep.subr.bf16.mxu0 0
        %548 = vmatpush1.bf16.msra.mxu0 0
        %549 = vmatprep.subr.bf16.mxu0 0
        %550 = vmatpush1.bf16.msra.mxu0 0
        %551 = vmatprep.subr.bf16.mxu0 0
        %552 = vmatpush1.bf16.msra.mxu0 0
        %553 = vmatprep.subr.bf16.mxu0 0
        %554 = vmatpush1.bf16.msra.mxu0 0
        %555 = vmatprep.subr.bf16.mxu0 0
        %556 = vmatpush1.bf16.msra.mxu0 0
        %557 = vmatprep.subr.bf16.mxu0 0
        %558 = vmatpush1.bf16.msra.mxu0 0
        %559 = vmatprep.subr.bf16.mxu0 0
        %560 = vmatpush1.bf16.msra.mxu0 0
        %561 = vmatprep.subr.bf16.mxu0 0
        %562 = vmatpush1.bf16.msra.mxu0 0
        %563 = vmatprep.subr.bf16.mxu0 0
        %564 = vmatpush1.bf16.msra.mxu0 0
        %565 = vmatprep.subr.bf16.mxu0 0
        %566 = vmatpush1.bf16.msra.mxu0 0
        %567 = vmatprep.subr.bf16.mxu0 0
        %568 = vmatpush1.bf16.msra.mxu0 0
        %569 = vmatprep.subr.bf16.mxu0 0
        %570 = vmatpush1.bf16.msra.mxu0 0
        %571 = vmatprep.mubr.bf16.mxu0 0
        %572 = vmatmul.mubr.bf16.gmra.mrb[0].mxu0 %v534
        %v573 = vpop.f32.mrb[0].mxu0
        %v574 = vadd.f32 0.0, %v573
        %v575 = vpop.f32.mrb[0].mxu0
        %v576 = vpop.f32.mrb[0].mxu0
        %v577 = vpop.f32.mrb[0].mxu0
        %578 = vdwg.mxu0
        %v579 = vadd.f32 %v526, %v574
        %v580 = vld [vmem:[%s4] sm:$0xff]
        %582 = vset.pattern.permute.xlu0 0
        %583 = vperm.xlu0 %582, %v580
        %v584 = vpop.permute.xlu0 %583
        %v586 = vadd.f32 %v579, %v584
        %v587 = vmax.f32 %v586, 0.0
        %588 = vst.msk [vmem:[%s215] sm:$0xff] %vm437, %v587
        %s589 = sand.u32 %s137, 1
        %s590 = scalar_lea.sflag [#allocation3], %s589
        %s591 = sand.u32 %s137, 1
        %s592 = smul.addr %s591, 8
        %s593 = scalar_lea.vmem [#allocation2], %s592
        // Predicated region
        $region41: #{tpu_custom_call.1} parent=39 // pred_check
          %p594 = pneg %p147
        $region42: #{tpu_custom_call.1} parent=39 // pred_check_branch
          %596 = sbr.rel (%p594) target = $region44
        $region43: #{tpu_custom_call.1} parent=39 // pred_region
          %s598 = ssub.s32 128, 128
          %599 = vsyncadd %s590, %s598
          %s600 = smul.addr %s19, 128
          %s601 = scalar_lea.hbm %s5, %s600
          %s603 = sshll.u32 %s593, 4
          %s604 = int_to_ptr.vmem [resolvable:$true] %s603
          %606 = dma.vmem_to_hbm [thread:$0]  %s604, 128, %s601, %s590
        $region44: #{tpu_custom_call.1} parent=39 // pred_fallthru
          _
      $region40: #{tpu_custom_call.1} parent=5 // pred_fallthru
        _
      %p607 = scmp.le.s32.totalorder 2, %s14
      // Predicated region
      $region45: #{tpu_custom_call.1} parent=5 // pred_check
        %p608 = pneg %p607
      $region46: #{tpu_custom_call.1} parent=5 // pred_check_branch
        %610 = sbr.rel (%p608) target = $region48
      $region47: #{tpu_custom_call.1} parent=5 // pred_region
        %s611 = ssub.s32 %s14, 2
        // Predicated region
        $region49: #{tpu_custom_call.1} parent=47 // pred_check
          %p612 = pneg %p153
        $region50: #{tpu_custom_call.1} parent=47 // pred_check_branch
          %614 = sbr.rel (%p612) target = $region52
        $region51: #{tpu_custom_call.1} parent=47 // pred_region
          %s615 = sand.u32 %s138, 1
          %s616 = scalar_lea.sflag [#allocation3], %s615
          %s617 = sand.u32 %s138, 1
          %s618 = smul.addr %s617, 8
          %s619 = scalar_lea.vmem [#allocation2], %s618
          %620 = dma.done %s616, 128
        $region52: #{tpu_custom_call.1} parent=47 // pred_fallthru
          _
      $region48: #{tpu_custom_call.1} parent=5 // pred_fallthru
        _
    $region6: #{tpu_custom_call.1} parent=1 // loop_footer
      %s18 = sadd.s32 1, %s14
    $region7: #{tpu_custom_call.1} parent=1 // loop_footer_branch
      %13 = sbr.rel target = $region3
    $region8: #{tpu_custom_call.1} parent=1 // loop_exit
      _
    %621 = vsyncpa [#allocation3], 1
    %s622 = scalar_lea.sflag [#allocation3], 1
    %623 = vsyncpa %s622, 1

</llo_original>
